<compile_context>
chip_gen: v6e
topology: v6e:2x2x1
jax: 0.10.0
libtpu: 0.0.40
codegen_flags: <defaults>
</compile_context>

<pallas_src>
import jax
import jax.numpy as jnp
from jax.experimental import pallas as pl
from jax.experimental.pallas import tpu as pltpu


def _policy_predictor_kernel(sel_ref, mag_ref, prob_ref, mag_out_ref, slab_ref):
    # sel_ref:     (1, N)   raw selection logits
    # mag_ref:     (D, N)   raw magnitude logits (stored transposed, lane-dense)
    # prob_ref:    (1, N)   softmax(sel)
    # mag_out_ref: (D, N)   sigmoid(mag)
    # slab_ref:    (1+D, N) VMEM scratch: fuses softmax + sigmoid into one
    #              exp push and one reciprocal.

    w = sel_ref[...]                                     # (1, N)
    m = jnp.max(w, axis=-1, keepdims=True)               # (1, 1) stable-softmax max

    # Build the fused pre-activation slab:
    #   row 0     : w - m       (softmax numerator exponent)
    #   rows 1..D : -mag        (sigmoid exponent, 1/(1+exp(-x)))
    slab_ref[0:1, :] = w - m
    slab_ref[1:, :] = -mag_ref[...]
    pre = slab_ref[...]                                  # (1+D, N)

    e = jnp.exp(pre)                                     # single EUP exp push

    denom = jnp.sum(e[0:1, :], axis=-1, keepdims=True)   # (1, 1) softmax denominator
    row = jax.lax.broadcasted_iota(jnp.int32, pre.shape, 0)
    is_sel = row == 0                                    # row 0 -> softmax, rest -> sigmoid

    d = jnp.where(is_sel, denom, 1.0 + e)                # per-row divisor
    r = pl.reciprocal(d, approx=True)                    # single EUP vrcp
    r = r * (2.0 - d * r)                                # one NR step -> ~1e-7 rel err

    out = jnp.where(is_sel, e, 1.0) * r                  # softmax: e/denom, sigmoid: 1/(1+e)

    prob_ref[...] = out[0:1, :]
    mag_out_ref[...] = out[1:, :]


def policy_predictor_forward(policy_selection_weights, policy_mag_weights_t):
    """Pallas equivalent of SegOptAug.forward() -> (prob_sub_policy, mag_sub_policy).

    Args:
      policy_selection_weights: (N,)   f32 selection logits.
      policy_mag_weights_t:     (D, N) f32 magnitude logits, stored transposed
                                (lane-dense) as the parameter layout.

    Returns:
      prob:  (N,)   softmax over sub-policies.
      mag_t: (D, N) sigmoid magnitudes (content-identical to the original
             (N, D) layout; downstream indexes column n instead of row n).
    """
    N = policy_selection_weights.shape[0]
    D = policy_mag_weights_t.shape[0]

    sel = policy_selection_weights.astype(jnp.float32).reshape(1, N)
    mag = policy_mag_weights_t.astype(jnp.float32)

    prob, mag_t = pl.pallas_call(
        _policy_predictor_kernel,
        out_shape=(
            jax.ShapeDtypeStruct((1, N), jnp.float32),
            jax.ShapeDtypeStruct((D, N), jnp.float32),
        ),
        in_specs=[
            pl.BlockSpec(memory_space=pltpu.MemorySpace.VMEM),
            pl.BlockSpec(memory_space=pltpu.MemorySpace.VMEM),
        ],
        out_specs=(
            pl.BlockSpec(memory_space=pltpu.MemorySpace.VMEM),
            pl.BlockSpec(memory_space=pltpu.MemorySpace.VMEM),
        ),
        scratch_shapes=[pltpu.VMEM((1 + D, N), jnp.float32)],
    )(sel, mag)

    return prob.reshape(N), mag_t


if __name__ == "__main__":
    # Synthetic, deterministic "PolicyPredictor" parameters.
    # sub_policy_dim = 2, 14 base augment ops -> C(14,2) + 14 = 105 sub-policies
    # (same counting as get_sub_policies over pairs with replacement).
    sub_policy_dim = 2
    num_ops = 14
    num_sub_policies = num_ops * (num_ops - 1) // 2 + num_ops  # 105

    key = jax.random.PRNGKey(0)
    k1, k2 = jax.random.split(key)
    policy_selection_weights = 1e-3 * jax.random.normal(
        k1, (num_sub_policies,), dtype=jnp.float32
    )
    policy_mag_weights_nd = jax.random.normal(
        k2, (num_sub_policies, sub_policy_dim), dtype=jnp.float32
    )
    # Parameter is stored transposed (one-time, at init) so forward() needs no
    # layout shuffling at all.
    policy_mag_weights_t = policy_mag_weights_nd.T  # (D, N)

    fwd = jax.jit(policy_predictor_forward)
    prob, mag_t = fwd(policy_selection_weights, policy_mag_weights_t)
    prob = jax.block_until_ready(prob)
    mag_t = jax.block_until_ready(mag_t)

    # Sanity check against pure-JAX reference.
    prob_ref = jax.nn.softmax(policy_selection_weights)
    mag_ref = jax.nn.sigmoid(policy_mag_weights_nd)  # (N, D)
    assert prob.shape == (num_sub_policies,)
    assert mag_t.shape == (sub_policy_dim, num_sub_policies)
    assert jnp.allclose(prob, prob_ref, atol=1e-5)
    assert jnp.allclose(mag_t, mag_ref.T, atol=1e-5)

    # TODO(synk): sample()/optimize() paths (multinomial sampling, per-image augment
    # ops, encoder forward, affine label warps, Adam step) are host/encoder-side logic
    # outside the module's forward() and are not expressible as a single Pallas kernel.
    print("KERNEL_OK")
</pallas_src>

<mosaic_0001>
module attributes {stable_mosaic.version = 11 : i64} {
  func.func @_policy_predictor_kernel(%arg0: memref<1x105xf32, #tpu.memory_space<vmem>>, %arg1: memref<2x105xf32, #tpu.memory_space<vmem>>, %arg2: memref<1x105xf32, #tpu.memory_space<vmem>>, %arg3: memref<2x105xf32, #tpu.memory_space<vmem>>, %arg4: memref<3x105xf32, #tpu.memory_space<vmem>>) attributes {dimension_semantics = [], scalar_prefetch = 0 : i64, scratch_operands = 1 : i64, tpu.core_type = #tpu.core_type<tc>} {
    %c0 = arith.constant 0 : index
    %c0_0 = arith.constant 0 : index
    %0 = vector.load %arg0[%c0, %c0_0] : memref<1x105xf32, #tpu.memory_space<vmem>>, vector<1x105xf32>
    %cst = arith.constant dense<0xFF800000> : vector<1xf32>
    %1 = vector.multi_reduction <maximumf>, %0, %cst [1] : vector<1x105xf32> to vector<1xf32>
    %2 = vector.shape_cast %1 : vector<1xf32> to vector<1x1xf32>
    %3 = vector.broadcast %2 : vector<1x1xf32> to vector<1x105xf32>
    %4 = arith.subf %0, %3 : vector<1x105xf32>
    %c0_1 = arith.constant 0 : index
    %c0_2 = arith.constant 0 : index
    %5 = vector.load %arg4[%c0_1, %c0_2] : memref<3x105xf32, #tpu.memory_space<vmem>>, vector<1x105xf32>
    tpu.vector_store %arg4[%c0_1, %c0_2], %4 {strides = array<i32>} : memref<3x105xf32, #tpu.memory_space<vmem>>, vector<1x105xf32>,
    %c0_3 = arith.constant 0 : index
    %c0_4 = arith.constant 0 : index
    %6 = vector.load %arg1[%c0_3, %c0_4] : memref<2x105xf32, #tpu.memory_space<vmem>>, vector<2x105xf32>
    %cst_5 = arith.constant 0.000000e+00 : f32
    %7 = vector.broadcast %cst_5 : f32 to vector<2x105xf32>
    %8 = arith.subf %7, %6 : vector<2x105xf32>
    %c1 = arith.constant 1 : index
    %c0_6 = arith.constant 0 : index
    %9 = vector.load %arg4[%c1, %c0_6] : memref<3x105xf32, #tpu.memory_space<vmem>>, vector<2x105xf32>
    tpu.vector_store %arg4[%c1, %c0_6], %8 {strides = array<i32>} : memref<3x105xf32, #tpu.memory_space<vmem>>, vector<2x105xf32>,
    %c0_7 = arith.constant 0 : index
    %c0_8 = arith.constant 0 : index
    %10 = vector.load %arg4[%c0_7, %c0_8] : memref<3x105xf32, #tpu.memory_space<vmem>>, vector<3x105xf32>
    %11 = math.exp %10 : vector<3x105xf32>
    %12 = vector.extract_strided_slice %11 {offsets = [0, 0], sizes = [1, 105], strides = [1, 1]} : vector<3x105xf32> to vector<1x105xf32>
    %cst_9 = arith.constant dense<0.000000e+00> : vector<1xf32>
    %13 = vector.multi_reduction <add>, %12, %cst_9 [1] : vector<1x105xf32> to vector<1xf32>
    %14 = vector.shape_cast %13 : vector<1xf32> to vector<1x1xf32>
    %15 = tpu.iota {dimensions = array<i32: 0>} : vector<3x105xi32>
    %c0_i32 = arith.constant 0 : i32
    %16 = vector.broadcast %c0_i32 : i32 to vector<3x105xi32>
    %17 = arith.cmpi eq, %15, %16 : vector<3x105xi32>
    %cst_10 = arith.constant 1.000000e+00 : f32
    %18 = vector.broadcast %cst_10 : f32 to vector<3x105xf32>
    %19 = arith.addf %18, %11 : vector<3x105xf32>
    %20 = vector.shape_cast %14 : vector<1x1xf32> to vector<1x1xf32>
    %21 = vector.broadcast %20 : vector<1x1xf32> to vector<3x105xf32>
    %22 = arith.select %17, %21, %19 : vector<3x105xi1>, vector<3x105xf32>
    %23 = tpu.reciprocal %22 {approx = true} : vector<3x105xf32> -> vector<3x105xf32>
    %24 = arith.mulf %22, %23 : vector<3x105xf32>
    %cst_11 = arith.constant 2.000000e+00 : f32
    %25 = vector.broadcast %cst_11 : f32 to vector<3x105xf32>
    %26 = arith.subf %25, %24 : vector<3x105xf32>
    %27 = arith.mulf %23, %26 : vector<3x105xf32>
    %cst_12 = arith.constant 1.000000e+00 : f32
    %28 = vector.broadcast %cst_12 : f32 to vector<3x105xf32>
    %29 = arith.select %17, %11, %28 : vector<3x105xi1>, vector<3x105xf32>
    %30 = arith.mulf %29, %27 : vector<3x105xf32>
    %31 = vector.extract_strided_slice %30 {offsets = [0, 0], sizes = [1, 105], strides = [1, 1]} : vector<3x105xf32> to vector<1x105xf32>
    %c0_13 = arith.constant 0 : index
    %c0_14 = arith.constant 0 : index
    %32 = vector.load %arg2[%c0_13, %c0_14] : memref<1x105xf32, #tpu.memory_space<vmem>>, vector<1x105xf32>
    tpu.vector_store %arg2[%c0_13, %c0_14], %31 {strides = array<i32>} : memref<1x105xf32, #tpu.memory_space<vmem>>, vector<1x105xf32>,
    %33 = vector.extract_strided_slice %30 {offsets = [1, 0], sizes = [2, 105], strides = [1, 1]} : vector<3x105xf32> to vector<2x105xf32>
    %c0_15 = arith.constant 0 : index
    %c0_16 = arith.constant 0 : index
    %34 = vector.load %arg3[%c0_15, %c0_16] : memref<2x105xf32, #tpu.memory_space<vmem>>, vector<2x105xf32>
    tpu.vector_store %arg3[%c0_15, %c0_16], %33 {strides = array<i32>} : memref<2x105xf32, #tpu.memory_space<vmem>>, vector<2x105xf32>,
    return
  }
}

</mosaic_0001>

<llo_original>
// kernel: policy_predictor_forward.1
$region0: #{policy_predictor_forward.1}
  #allocation0 [shape = 'u32[]', space=smem, size = 0x4, offset = 0x4, fixed_abs, tag = 'smem constant byte address 0x4 - core index']
  #allocation1 [shape = 'u32[144,128]{1,0:T(1,128)}', space=vmem, size = 0x12000, scoped, tag = 'internal scratch']
  #allocation2 [shape = 'f32[3,105]{1,0:T(4,128)}', space=vmem, size = 0x800, scoped, tag = 'scratch operand']
  %s0 = inlined_call_operand.vmem [shape: f32[1,105], index: 0, kind: input, shape index: {}]
  %s1 = inlined_call_operand.vmem [shape: f32[2,105], index: 1, kind: input, shape index: {}]
  %s2 = inlined_call_operand.hbm [shape: f32[1,105], index: 2, kind: output, shape index: {0}]
  %s3 = inlined_call_operand.hbm [shape: f32[2,105], index: 3, kind: output, shape index: {1}]
  %4 = xla_tuple %s2, %s3
  %s5 = sld [smem:[#allocation0]]
  $region26: #{policy_predictor_forward.1} parent=0
    _
  %s7 = ssub.s32 1, %s5
  %s8 = scalar_select 0, %s7, %s5
  $region1: #{policy_predictor_forward.1} parent=0
    #allocation3 [shape = 'u8[512]{0}', space=vmem, size = 0x400, scoped, tag = 'output window, operand 0, single buffered']
    #allocation4 [shape = 's32[1]{0}', space=sflag, size = 0x4, scoped, tag = 'scoped memory for policy_predictor_forward.1']
    #allocation5 [shape = 'u8[1024]{0}', space=vmem, size = 0x400, scoped, tag = 'output window, operand 1, single buffered']
    #allocation6 [shape = 's32[1]{0}', space=sflag, size = 0x4, scoped, tag = 'scoped memory for policy_predictor_forward.1']
    %9 = vsyncpa [#allocation4], 0
    %10 = vsyncpa [#allocation6], 0
    // Predicated region
    $region2: #{policy_predictor_forward.1} parent=1 // pred_check
      _
    $region3: #{policy_predictor_forward.1} parent=1 // pred_check_branch
      %12 = sbr.rel (0) target = $region5
    $region4: #{policy_predictor_forward.1} parent=1 // pred_region
      _
    $region5: #{policy_predictor_forward.1} parent=1 // pred_fallthru
      _
    // Predicated region
    $region6: #{policy_predictor_forward.1} parent=1 // pred_check
      _
    $region7: #{policy_predictor_forward.1} parent=1 // pred_check_branch
      %14 = sbr.rel (0) target = $region9
    $region8: #{policy_predictor_forward.1} parent=1 // pred_region
      _
    $region9: #{policy_predictor_forward.1} parent=1 // pred_fallthru
      _
    %v15 = vld [vmem:[%s0] sm:$0x1]
    %vm16 = vcmask 851968
    %v17 = vsel %vm16, %v15, -inf
    %18 = vmax.xlane.f32.xlu0 %v17
    %v19 = vpop.xlane.xlu0 %18
    %v20 = vsub.f32 %v15, %v19
    %21 = vst.msk [vmem:[#allocation2] sm:$0x1] %vm16, %v20
    %v22 = vld [vmem:[%s1] sm:$0x3]
    %v23 = vsub.f32 0.0, %v22
    %vm24 = vcmask 852992
    %25 = vst.msk [vmem:[#allocation2 + $0x1] sm:$0x3] %vm24, %v23
    %v26 = vld [vmem:[#allocation2] sm:$0x7]
    %v27 = vmul.f32 %v26, 1.442695
    %v28 = vpow.pop %v27
    %v29 = vsel %vm16, %v28, 0.0
    %30 = vadd.xlane.f32.xlu0 %v29
    %v31 = vpop.xlane.xlu0 %30
    %v32 = vlaneseq
    %v33 = vshrl.u32 %v32, 7
    %vm34 = vcmp.eq.s32.totalorder %v33, 0
    %v35 = vadd.f32 %v28, 1.0
    %v36 = vlaneseq
    %v37 = vshrl.u32 %v36, 7
    %v38 = vsub.s32 0, %v37
    %v39 = vrot.slane %v31, %v38
    %v40 = vsel %vm34, %v39, %v35
    %v41 = vrcp.pop %v40
    %v42 = vmul.f32 %v40, %v41
    %v43 = vsub.f32 2.0, %v42
    %v44 = vmul.f32 %v41, %v43
    %v45 = vsel %vm34, %v28, 1.0
    %v46 = vmul.f32 %v45, %v44
    %47 = vst.msk [vmem:[#allocation3] sm:$0x1] %vm16, %v46
    %vm48 = vcmask 854017
    %49 = vst.msk [vmem:[#allocation5 - $0x1] sm:$0x6] %vm48, %v46
    // Predicated region
    $region10: #{policy_predictor_forward.1} parent=1 // pred_check
      _
    $region11: #{policy_predictor_forward.1} parent=1 // pred_check_branch
      %51 = sbr.rel (0) target = $region13
    $region12: #{policy_predictor_forward.1} parent=1 // pred_region
      %s53 = ssub.s32 16, 16
      %54 = vsyncadd [#allocation4], %s53
      %s56 = sshll.u32 [#allocation3], 4
      %s57 = int_to_ptr.vmem [resolvable:$true] %s56
      %59 = dma.vmem_to_hbm [thread:$0]  %s57, 16, %s2, [#allocation4]
    $region13: #{policy_predictor_forward.1} parent=1 // pred_fallthru
      _
    // Predicated region
    $region14: #{policy_predictor_forward.1} parent=1 // pred_check
      _
    $region15: #{policy_predictor_forward.1} parent=1 // pred_check_branch
      %61 = sbr.rel (0) target = $region17
    $region16: #{policy_predictor_forward.1} parent=1 // pred_region
      %s63 = ssub.s32 32, 32
      %64 = vsyncadd [#allocation6], %s63
      %s66 = sshll.u32 [#allocation5], 4
      %s67 = int_to_ptr.vmem [resolvable:$true] %s66
      %69 = dma.vmem_to_hbm [thread:$0]  %s67, 32, %s3, [#allocation6]
    $region17: #{policy_predictor_forward.1} parent=1 // pred_fallthru
      _
    // Predicated region
    $region18: #{policy_predictor_forward.1} parent=1 // pred_check
      _
    $region19: #{policy_predictor_forward.1} parent=1 // pred_check_branch
      %71 = sbr.rel (0) target = $region21
    $region20: #{policy_predictor_forward.1} parent=1 // pred_region
      %72 = dma.done [#allocation4], 16
    $region21: #{policy_predictor_forward.1} parent=1 // pred_fallthru
      _
    // Predicated region
    $region22: #{policy_predictor_forward.1} parent=1 // pred_check
      _
    $region23: #{policy_predictor_forward.1} parent=1 // pred_check_branch
      %74 = sbr.rel (0) target = $region25
    $region24: #{policy_predictor_forward.1} parent=1 // pred_region
      %75 = dma.done [#allocation6], 32
    $region25: #{policy_predictor_forward.1} parent=1 // pred_fallthru
      _
    %76 = vsyncpa [#allocation4], 1
    %77 = vsyncpa [#allocation6], 1

</llo_original>
